<compile_context>
chip_gen: v7x
topology: tpu7x:2x2x1
jax: 0.10.0
libtpu: 0.0.40
codegen_flags: <defaults>
</compile_context>

<pallas_src>
import functools

import jax
import jax.numpy as jnp
from jax.experimental import pallas as pl
from jax.experimental.pallas import tpu as pltpu


def _rpn_head_kernel(x_ref, w_ref, b_ref, out_ref):
    # x_ref:   (1, C, T)   one batch, one H*W tile (T lanes)
    # w_ref:   (5A, C)     fused [cls_logits; bbox_pred] weight
    # b_ref:   (5A, 1)     fused bias
    # out_ref: (1, 5A, T)
    x = x_ref[0]                                   # (C, T)
    w = w_ref[...]                                 # (5A, C)
    acc = jnp.dot(w, x, preferred_element_type=jnp.float32)   # (5A, T)
    out_ref[0] = (acc + b_ref[...]).astype(out_ref.dtype)


def _pick_hw_tile(hw, max_tile=2048):
    """Largest H*W tile that (a) divides hw exactly and (b) is a multiple of
    128 lanes, capped at max_tile.  Falls back to the full extent for small
    or non-128-divisible spatial sizes (allowed: block dim == full dim)."""
    if hw <= max_tile:
        return hw
    for t in range(max_tile, 127, -128):
        if hw % t == 0:
            return t
    # TODO(synk): very large H*W that is not a multiple of 128 falls back to a
    # single block per batch; acceptable for FPN levels but not arbitrary input.
    return hw


def _forward_level(x_nchw, w_fused, b_fused, num_anchors):
    n, c, h, w = x_nchw.shape
    hw = h * w
    o = w_fused.shape[0]                 # 5 * num_anchors
    x3d = x_nchw.reshape(n, c, hw)       # free reshape, no transpose

    t_hw = _pick_hw_tile(hw)
    grid = (n, hw // t_hw)

    out = pl.pallas_call(
        _rpn_head_kernel,
        out_shape=jax.ShapeDtypeStruct((n, o, hw), x_nchw.dtype),
        grid_spec=pltpu.PrefetchScalarGridSpec(
            num_scalar_prefetch=0,
            grid=grid,
            in_specs=[
                pl.BlockSpec((1, c, t_hw), lambda b, i: (b, 0, i)),
                pl.BlockSpec((o, c), lambda b, i: (0, 0)),
                pl.BlockSpec((o, 1), lambda b, i: (0, 0)),
            ],
            out_specs=pl.BlockSpec((1, o, t_hw), lambda b, i: (b, 0, i)),
        ),
        compiler_params=pltpu.CompilerParams(
            dimension_semantics=("parallel", "parallel")),
    )(x3d, w_fused, b_fused)

    cls = out[:, :num_anchors, :].reshape(n, num_anchors, h, w)
    bbox = out[:, num_anchors:, :].reshape(n, 4 * num_anchors, h, w)
    return cls, bbox


@jax.jit
def _rpn_head_forward(feats, w_fused, b_fused):
    num_anchors = w_fused.shape[0] // 5
    logits, bbox_reg = [], []
    for x in feats:
        l, b = _forward_level(x, w_fused, b_fused, num_anchors)
        logits.append(l)
        bbox_reg.append(b)
    return tuple(logits), tuple(bbox_reg)


class RPNHeadConvRegressorPallas:
    """JAX/Pallas port of maskrcnn_benchmark RPNHeadConvRegressor."""

    def __init__(self, in_channels, num_anchors, key):
        k1, k2 = jax.random.split(key)
        self.num_anchors = num_anchors
        # torch.nn.init.normal_(weight, std=0.01); bias = 0
        self.w_cls = (0.01 * jax.random.normal(
            k1, (num_anchors, in_channels, 1, 1))).astype(jnp.float32)
        self.b_cls = jnp.zeros((num_anchors,), jnp.float32)
        self.w_bbox = (0.01 * jax.random.normal(
            k2, (num_anchors * 4, in_channels, 1, 1))).astype(jnp.float32)
        self.b_bbox = jnp.zeros((num_anchors * 4,), jnp.float32)

        # Fused (5A, C) weight and (5A, 1) bias: one MXU pass for both heads.
        wc = self.w_cls.reshape(num_anchors, in_channels)
        wb = self.w_bbox.reshape(num_anchors * 4, in_channels)
        self.w_fused = jnp.concatenate([wc, wb], axis=0)
        self.b_fused = jnp.concatenate(
            [self.b_cls, self.b_bbox], axis=0).reshape(-1, 1)

    def __call__(self, x):
        assert isinstance(x, (list, tuple))
        logits, bbox_reg = _rpn_head_forward(tuple(x), self.w_fused,
                                             self.b_fused)
        return list(logits), list(bbox_reg)


if __name__ == "__main__":
    key = jax.random.PRNGKey(0)
    k_param, k_x0, k_x1 = jax.random.split(key, 3)

    in_channels = 16
    num_anchors = 3
    head = RPNHeadConvRegressorPallas(in_channels, num_anchors, k_param)

    # Input is a list of NCHW feature maps (FPN levels).
    x0 = jax.random.normal(k_x0, (2, in_channels, 16, 16), jnp.float32)
    x1 = jax.random.normal(k_x1, (2, in_channels, 8, 8), jnp.float32)
    feats = [x0, x1]

    logits, bbox_reg = head(feats)
    jax.block_until_ready(logits)
    jax.block_until_ready(bbox_reg)

    # Sanity check against a pure-JAX reference (1x1 conv == channel matmul).
    wc = head.w_cls.reshape(num_anchors, in_channels)
    wb = head.w_bbox.reshape(num_anchors * 4, in_channels)
    for y, l, b in zip(feats, logits, bbox_reg):
        ref_l = jnp.einsum("nchw,oc->nohw", y, wc) + head.b_cls[None, :, None, None]
        ref_b = jnp.einsum("nchw,oc->nohw", y, wb) + head.b_bbox[None, :, None, None]
        assert l.shape == (y.shape[0], num_anchors, y.shape[2], y.shape[3])
        assert b.shape == (y.shape[0], num_anchors * 4, y.shape[2], y.shape[3])
        assert jnp.allclose(l, ref_l, atol=1e-5), "cls_logits mismatch"
        assert jnp.allclose(b, ref_b, atol=1e-5), "bbox_pred mismatch"

    print("KERNEL_OK")
</pallas_src>

<mosaic_0001>
module attributes {stable_mosaic.version = 11 : i64} {
  func.func @_rpn_head_kernel(%arg0: i32, %arg1: i32, %arg2: memref<1x16x256xf32, #tpu.memory_space<vmem>>, %arg3: memref<15x16xf32, #tpu.memory_space<vmem>>, %arg4: memref<15x1xf32, #tpu.memory_space<vmem>>, %arg5: memref<1x15x256xf32, #tpu.memory_space<vmem>>) attributes {dimension_semantics = [#tpu.dimension_semantics<parallel>, #tpu.dimension_semantics<parallel>], iteration_bounds = array<i64: 2, 1>, scalar_prefetch = 0 : i64, scratch_operands = 0 : i64, tpu.core_type = #tpu.core_type<tc>, window_params = [{transform_indices = @transform_0, window_bounds = array<i64: 1, 16, 256>}, {pipeline_mode = #tpu.pipeline_mode<synchronous>, transform_indices = @transform_1, window_bounds = array<i64: 15, 16>}, {pipeline_mode = #tpu.pipeline_mode<synchronous>, transform_indices = @transform_2, window_bounds = array<i64: 15, 1>}, {transform_indices = @transform_3, window_bounds = array<i64: 1, 15, 256>}]} {
    %c0 = arith.constant 0 : index
    %c0_0 = arith.constant 0 : index
    %c0_1 = arith.constant 0 : index
    %0 = vector.load %arg2[%c0, %c0_0, %c0_1] : memref<1x16x256xf32, #tpu.memory_space<vmem>>, vector<1x16x256xf32>
    %1 = vector.shape_cast %0 : vector<1x16x256xf32> to vector<16x256xf32>
    %c0_2 = arith.constant 0 : index
    %c0_3 = arith.constant 0 : index
    %2 = vector.load %arg3[%c0_2, %c0_3] : memref<15x16xf32, #tpu.memory_space<vmem>>, vector<15x16xf32>
    %cst = arith.constant dense<0.000000e+00> : vector<15x256xf32>
    %3 = tpu.matmul %2, %1, %cst {dimension_numbers = #tpu.dot_dimension_numbers<[1], [0], [0], [1], [0, 0, 1, 1], [], []>} : vector<15x16xf32>, vector<16x256xf32>, vector<15x256xf32> -> vector<15x256xf32>
    %c0_4 = arith.constant 0 : index
    %c0_5 = arith.constant 0 : index
    %4 = vector.load %arg4[%c0_4, %c0_5] : memref<15x1xf32, #tpu.memory_space<vmem>>, vector<15x1xf32>
    %5 = vector.broadcast %4 : vector<15x1xf32> to vector<15x256xf32>
    %6 = arith.addf %3, %5 : vector<15x256xf32>
    %c0_6 = arith.constant 0 : index
    %c0_7 = arith.constant 0 : index
    %c0_8 = arith.constant 0 : index
    %7 = vector.load %arg5[%c0_6, %c0_7, %c0_8] : memref<1x15x256xf32, #tpu.memory_space<vmem>>, vector<1x15x256xf32>
    %8 = vector.shape_cast %7 : vector<1x15x256xf32> to vector<15x256xf32>
    %9 = vector.shape_cast %6 : vector<15x256xf32> to vector<1x15x256xf32>
    tpu.vector_store %arg5[%c0_6, %c0_7, %c0_8], %9 {strides = array<i32>} : memref<1x15x256xf32, #tpu.memory_space<vmem>>, vector<1x15x256xf32>,
    return
  }
  func.func @transform_0(%arg0: i32, %arg1: i32) -> (i32, i32, i32) {
    %c0_i32 = arith.constant 0 : i32
    %c0_i32_0 = arith.constant 0 : i32
    return %arg0, %c0_i32, %arg1 : i32, i32, i32
  }
  func.func @transform_1(%arg0: i32, %arg1: i32) -> (i32, i32) {
    %c0_i32 = arith.constant 0 : i32
    %c0_i32_0 = arith.constant 0 : i32
    %c0_i32_1 = arith.constant 0 : i32
    return %c0_i32, %c0_i32_0 : i32, i32
  }
  func.func @transform_2(%arg0: i32, %arg1: i32) -> (i32, i32) {
    %c0_i32 = arith.constant 0 : i32
    %c0_i32_0 = arith.constant 0 : i32
    %c0_i32_1 = arith.constant 0 : i32
    return %c0_i32, %c0_i32_0 : i32, i32
  }
  func.func @transform_3(%arg0: i32, %arg1: i32) -> (i32, i32, i32) {
    %c0_i32 = arith.constant 0 : i32
    %c0_i32_0 = arith.constant 0 : i32
    return %arg0, %c0_i32, %arg1 : i32, i32, i32
  }
}

module attributes {stable_mosaic.version = 11 : i64} {
  func.func @_rpn_head_kernel(%arg0: i32, %arg1: i32, %arg2: memref<1x16x64xf32, #tpu.memory_space<vmem>>, %arg3: memref<15x16xf32, #tpu.memory_space<vmem>>, %arg4: memref<15x1xf32, #tpu.memory_space<vmem>>, %arg5: memref<1x15x64xf32, #tpu.memory_space<vmem>>) attributes {dimension_semantics = [#tpu.dimension_semantics<parallel>, #tpu.dimension_semantics<parallel>], iteration_bounds = array<i64: 2, 1>, scalar_prefetch = 0 : i64, scratch_operands = 0 : i64, tpu.core_type = #tpu.core_type<tc>, window_params = [{transform_indices = @transform_0, window_bounds = array<i64: 1, 16, 64>}, {pipeline_mode = #tpu.pipeline_mode<synchronous>, transform_indices = @transform_1, window_bounds = array<i64: 15, 16>}, {pipeline_mode = #tpu.pipeline_mode<synchronous>, transform_indices = @transform_2, window_bounds = array<i64: 15, 1>}, {transform_indices = @transform_3, window_bounds = array<i64: 1, 15, 64>}]} {
    %c0 = arith.constant 0 : index
    %c0_0 = arith.constant 0 : index
    %c0_1 = arith.constant 0 : index
    %0 = vector.load %arg2[%c0, %c0_0, %c0_1] : memref<1x16x64xf32, #tpu.memory_space<vmem>>, vector<1x16x64xf32>
    %1 = vector.shape_cast %0 : vector<1x16x64xf32> to vector<16x64xf32>
    %c0_2 = arith.constant 0 : index
    %c0_3 = arith.constant 0 : index
    %2 = vector.load %arg3[%c0_2, %c0_3] : memref<15x16xf32, #tpu.memory_space<vmem>>, vector<15x16xf32>
    %cst = arith.constant dense<0.000000e+00> : vector<15x64xf32>
    %3 = tpu.matmul %2, %1, %cst {dimension_numbers = #tpu.dot_dimension_numbers<[1], [0], [0], [1], [0, 0, 1, 1], [], []>} : vector<15x16xf32>, vector<16x64xf32>, vector<15x64xf32> -> vector<15x64xf32>
    %c0_4 = arith.constant 0 : index
    %c0_5 = arith.constant 0 : index
    %4 = vector.load %arg4[%c0_4, %c0_5] : memref<15x1xf32, #tpu.memory_space<vmem>>, vector<15x1xf32>
    %5 = vector.broadcast %4 : vector<15x1xf32> to vector<15x64xf32>
    %6 = arith.addf %3, %5 : vector<15x64xf32>
    %c0_6 = arith.constant 0 : index
    %c0_7 = arith.constant 0 : index
    %c0_8 = arith.constant 0 : index
    %7 = vector.load %arg5[%c0_6, %c0_7, %c0_8] : memref<1x15x64xf32, #tpu.memory_space<vmem>>, vector<1x15x64xf32>
    %8 = vector.shape_cast %7 : vector<1x15x64xf32> to vector<15x64xf32>
    %9 = vector.shape_cast %6 : vector<15x64xf32> to vector<1x15x64xf32>
    tpu.vector_store %arg5[%c0_6, %c0_7, %c0_8], %9 {strides = array<i32>} : memref<1x15x64xf32, #tpu.memory_space<vmem>>, vector<1x15x64xf32>,
    return
  }
  func.func @transform_0(%arg0: i32, %arg1: i32) -> (i32, i32, i32) {
    %c0_i32 = arith.constant 0 : i32
    %c0_i32_0 = arith.constant 0 : i32
    return %arg0, %c0_i32, %arg1 : i32, i32, i32
  }
  func.func @transform_1(%arg0: i32, %arg1: i32) -> (i32, i32) {
    %c0_i32 = arith.constant 0 : i32
    %c0_i32_0 = arith.constant 0 : i32
    %c0_i32_1 = arith.constant 0 : i32
    return %c0_i32, %c0_i32_0 : i32, i32
  }
  func.func @transform_2(%arg0: i32, %arg1: i32) -> (i32, i32) {
    %c0_i32 = arith.constant 0 : i32
    %c0_i32_0 = arith.constant 0 : i32
    %c0_i32_1 = arith.constant 0 : i32
    return %c0_i32, %c0_i32_0 : i32, i32
  }
  func.func @transform_3(%arg0: i32, %arg1: i32) -> (i32, i32, i32) {
    %c0_i32 = arith.constant 0 : i32
    %c0_i32_0 = arith.constant 0 : i32
    return %arg0, %c0_i32, %arg1 : i32, i32, i32
  }
}

</mosaic_0001>

<llo_original>
// kernel: _rpn_head_forward.2
$region0: #{_rpn_head_forward.2}
  #allocation0 [shape = 'u32[]', space=smem, size = 0x4, offset = 0x4, fixed_abs, tag = 'smem constant byte address 0x4 - core index']
  #allocation1 [shape = 'u32[144,128]{1,0:T(1,128)}', space=vmem, size = 0x12000, scoped, tag = 'internal scratch']
  %s0 = inlined_call_operand.vmem [shape: f32[2,16,256], index: 0, kind: input, shape index: {}]
  %s1 = inlined_call_operand.vmem [shape: f32[15,16], index: 1, kind: input, shape index: {}]
  %s2 = inlined_call_operand.vmem [shape: f32[15,1], index: 2, kind: input, shape index: {}]
  %s3 = inlined_call_operand.vmem [shape: f32[2,15,256], index: 3, kind: output, shape index: {}]
  %s4 = sld [smem:[#allocation0]]
  $region45: #{_rpn_head_forward.2} parent=0
    _
  %s6 = ssub.s32 1, %s4
  %s7 = scalar_select 0, %s6, %s4
  loop: start=0, step=1, limit=4
  $region2: #{_rpn_head_forward.2} parent=0 // loop_pre_header
    _
  $region3: #{_rpn_head_forward.2} parent=0 // loop_header
    %s9 = sphi 0, %s13
    %p10 = scmp.ge.s32.totalorder %s9, 4
    %s16 = sphi 0, %s28
    %s17 = sphi 0, %s24
    %s18 = sphi 0, %s16
    %s19 = sphi 0, %s17
    %s20 = sphi 0, %s18
    %s21 = sphi 0, %s19
    %s33 = sphi 0, %s35
    %s36 = sphi 0, %s33
    %s37 = sphi 0, %s36
    %s53 = sphi 0, %s37
    %s57 = sphi 0, %s57
    %s59 = sphi 0, %s57
    %s60 = sphi 0, %s59
    %s74 = sphi 0, %s60
    %s78 = sphi 0, %s78
    %s80 = sphi 0, %s78
    %s81 = sphi 0, %s80
    %s95 = sphi 0, %s81
    %s103 = sphi 0, %s105
    %s106 = sphi 0, %s103
    %s107 = sphi 0, %s106
    %s123 = sphi 0, %s107
  $region4: #{_rpn_head_forward.2} parent=0 // loop_header_branch
    %12 = sbr.rel (%p10) target = $region8
  $region5: #{_rpn_head_forward.2} parent=0 // loop_body
    %s14 = ssub.s32 %s9, 1
    %s15 = ssub.s32 %s9, 2
    %s22 = sadd.s32 1, %s17
    %p23 = scmp.ge.s32.totalorder %s22, 1
    %s24 = scalar_select %p23, 0, %s22
    %s25 = sadd.s32 1, %s16
    %s26 = scalar_select %p23, %s25, %s16
    %p27 = scmp.ge.s32.totalorder %s26, 2
    %s28 = scalar_select %p27, 0, %s26
    %s29 = ssub.s32 %s16, %s28
    %s30 = ssub.s32 %s17, %s24
    %s31 = sor.u32 %s29, %s30
    %p32 = scmp.eq.s32.totalorder %s31, 0
    %s34 = sadd.s32 %s33, 1
    %s35 = scalar_select %p32, %s33, %s34
    %p38 = pneg %p32
    %p39 = scmp.eq.s32.totalorder %s9, 1
    %p40 = por %p38, %p39
    %p41 = scmp.ne.s32.totalorder %s33, %s36
    %p42 = scmp.eq.s32.totalorder %s9, 0
    %p43 = por %p41, %p42
    %p44 = scmp.ne.s32.totalorder %s33, %s36
    %p45 = scmp.eq.s32.totalorder %s14, 1
    %p46 = por %p44, %p45
    %p47 = scmp.ne.s32.totalorder %s36, %s37
    %p48 = scmp.eq.s32.totalorder %s14, 0
    %p49 = por %p47, %p48
    %p50 = scmp.ne.s32.totalorder %s36, %s37
    %p51 = scmp.eq.s32.totalorder %s15, 1
    %p52 = por %p50, %p51
    %p54 = scmp.ne.s32.totalorder %s37, %s53
    %p55 = scmp.eq.s32.totalorder %s15, 0
    %p56 = por %p54, %p55
    %s58 = sadd.s32 %s57, 1
    %p61 = scmp.eq.s32.totalorder %s9, 1
    %p62 = scmp.ne.s32.totalorder %s57, %s59
    %p63 = scmp.eq.s32.totalorder %s9, 0
    %p64 = por %p62, %p63
    %p65 = scmp.ne.s32.totalorder %s57, %s59
    %p66 = scmp.eq.s32.totalorder %s14, 1
    %p67 = por %p65, %p66
    %p68 = scmp.ne.s32.totalorder %s59, %s60
    %p69 = scmp.eq.s32.totalorder %s14, 0
    %p70 = por %p68, %p69
    %p71 = scmp.ne.s32.totalorder %s59, %s60
    %p72 = scmp.eq.s32.totalorder %s15, 1
    %p73 = por %p71, %p72
    %p75 = scmp.ne.s32.totalorder %s60, %s74
    %p76 = scmp.eq.s32.totalorder %s15, 0
    %p77 = por %p75, %p76
    %s79 = sadd.s32 %s78, 1
    %p82 = scmp.eq.s32.totalorder %s9, 1
    %p83 = scmp.ne.s32.totalorder %s78, %s80
    %p84 = scmp.eq.s32.totalorder %s9, 0
    %p85 = por %p83, %p84
    %p86 = scmp.ne.s32.totalorder %s78, %s80
    %p87 = scmp.eq.s32.totalorder %s14, 1
    %p88 = por %p86, %p87
    %p89 = scmp.ne.s32.totalorder %s80, %s81
    %p90 = scmp.eq.s32.totalorder %s14, 0
    %p91 = por %p89, %p90
    %p92 = scmp.ne.s32.totalorder %s80, %s81
    %p93 = scmp.eq.s32.totalorder %s15, 1
    %p94 = por %p92, %p93
    %p96 = scmp.ne.s32.totalorder %s81, %s95
    %p97 = scmp.eq.s32.totalorder %s15, 0
    %p98 = por %p96, %p97
    %s99 = ssub.s32 %s16, %s28
    %s100 = ssub.s32 %s17, %s24
    %s101 = sor.u32 %s99, %s100
    %p102 = scmp.eq.s32.totalorder %s101, 0
    %s104 = sadd.s32 %s103, 1
    %s105 = scalar_select %p102, %s103, %s104
    %p108 = pneg %p102
    %p109 = scmp.eq.s32.totalorder %s9, 1
    %p110 = por %p108, %p109
    %p111 = scmp.ne.s32.totalorder %s103, %s106
    %p112 = scmp.eq.s32.totalorder %s9, 0
    %p113 = por %p111, %p112
    %p114 = scmp.ne.s32.totalorder %s103, %s106
    %p115 = scmp.eq.s32.totalorder %s14, 1
    %p116 = por %p114, %p115
    %p117 = scmp.ne.s32.totalorder %s106, %s107
    %p118 = scmp.eq.s32.totalorder %s14, 0
    %p119 = por %p117, %p118
    %p120 = scmp.ne.s32.totalorder %s106, %s107
    %p121 = scmp.eq.s32.totalorder %s15, 1
    %p122 = por %p120, %p121
    %p124 = scmp.ne.s32.totalorder %s107, %s123
    %p125 = scmp.eq.s32.totalorder %s15, 0
    %p126 = por %p124, %p125
    %p127 = scmp.le.s32.totalorder 1, %s9
    %p128 = scmp.lt.s32.totalorder %s9, 3
    %p129 = pnand %p127, %p128
    %p130 = pneg %p129
    // Predicated region
    $region9: #{_rpn_head_forward.2} parent=5 // pred_check
      _
    $region10: #{_rpn_head_forward.2} parent=5 // pred_check_branch
      %132 = sbr.rel (%p129) target = $region12
    $region11: #{_rpn_head_forward.2} parent=5 // pred_region
      %s133 = ssub.s32 %s9, 1
      // Predicated region
      $region13: #{_rpn_head_forward.2} parent=11 // pred_check
        %p134 = pneg %p70
      $region14: #{_rpn_head_forward.2} parent=11 // pred_check_branch
        %136 = sbr.rel (%p134) target = $region16
      $region15: #{_rpn_head_forward.2} parent=11 // pred_region
        _
      $region16: #{_rpn_head_forward.2} parent=11 // pred_fallthru
        _
      // Predicated region
      $region17: #{_rpn_head_forward.2} parent=11 // pred_check
        %p137 = pneg %p91
      $region18: #{_rpn_head_forward.2} parent=11 // pred_check_branch
        %139 = sbr.rel (%p137) target = $region20
      $region19: #{_rpn_head_forward.2} parent=11 // pred_region
        _
      $region20: #{_rpn_head_forward.2} parent=11 // pred_fallthru
        _
    $region12: #{_rpn_head_forward.2} parent=5 // pred_fallthru
      _
    %p140 = scmp.lt.s32.totalorder %s9, 2
    // Predicated region
    $region21: #{_rpn_head_forward.2} parent=5 // pred_check
      %p141 = pneg %p140
    $region22: #{_rpn_head_forward.2} parent=5 // pred_check_branch
      %143 = sbr.rel (%p141) target = $region24
    $region23: #{_rpn_head_forward.2} parent=5 // pred_region
      // Predicated region
      $region25: #{_rpn_head_forward.2} parent=23 // pred_check
        %p144 = pneg %p43
      $region26: #{_rpn_head_forward.2} parent=23 // pred_check_branch
        %146 = sbr.rel (%p144) target = $region28
      $region27: #{_rpn_head_forward.2} parent=23 // pred_region
        %s147 = smul.u32 2, %s17
        %p148 = scmp.lt.s32.totalorder %s16, 1
        %s149 = scalar_select %p148, %s16, 1
        %p150 = scmp.lt.s32.totalorder %s147, 1
        %s151 = scalar_select %p150, %s147, 1
        %s152 = smul.addr %s149, 4
        %s153 = sadd.s32 %s151, %s152
        %s154 = smul.addr %s153, 8
        %s155 = scalar_lea.vmem %s0, %s154
        %s156 = smul.u32 2, %s17
      $region28: #{_rpn_head_forward.2} parent=23 // pred_fallthru
        _
    $region24: #{_rpn_head_forward.2} parent=5 // pred_fallthru
      _
    %p157 = scmp.le.s32.totalorder 1, %s9
    %p158 = scmp.lt.s32.totalorder %s9, 3
    %p159 = pnand %p157, %p158
    %p160 = pneg %p159
    // Predicated region
    $region29: #{_rpn_head_forward.2} parent=5 // pred_check
      _
    $region30: #{_rpn_head_forward.2} parent=5 // pred_check_branch
      %162 = sbr.rel (%p159) target = $region32
    $region31: #{_rpn_head_forward.2} parent=5 // pred_region
      %s163 = ssub.s32 %s9, 1
      %s164 = smul.u32 2, %s19
      %p165 = scmp.lt.s32.totalorder %s18, 1
      %s166 = scalar_select %p165, %s18, 1
      %p167 = scmp.lt.s32.totalorder %s164, 1
      %s168 = scalar_select %p167, %s164, 1
      %s169 = smul.addr %s166, 4
      %s170 = sadd.s32 %s168, %s169
      %s171 = smul.addr %s170, 8
      %s172 = scalar_lea.vmem %s0, %s171
      %p173 = pneg %p49
      %p174 = pneg %p46
      %p175 = pneg %p70
      %p176 = pneg %p67
      %p177 = pneg %p91
      %p178 = pneg %p88
      %p179 = pneg %p119
      %p180 = pneg %p116
      %s181 = smul.u32 2, %s19
      %p182 = scmp.lt.s32.totalorder %s18, 1
      %s183 = scalar_select %p182, %s18, 1
      %p184 = scmp.lt.s32.totalorder %s181, 1
      %s185 = scalar_select %p184, %s181, 1
      %s186 = smul.addr %s183, 4
      %s187 = sadd.s32 %s185, %s186
      %s188 = smul.addr %s187, 8
      %s189 = scalar_lea.vmem %s3, %s188
      %s190 = smul.u32 2, %s19
      %p191 = scmp.lt.s32.totalorder %s18, 1
      %s192 = scalar_select %p191, %s18, 1
      %p193 = scmp.lt.s32.totalorder %s190, 1
      %s194 = scalar_select %p193, %s190, 1
      %s195 = smul.addr %s192, 4
      %s196 = sadd.s32 %s194, %s195
      %s197 = smul.addr %s196, 8
      %s198 = scalar_lea.vmem %s0, %s197
      %s199 = smul.u32 2, %s19
      %s200 = smul.u32 2, %s19
      %p201 = scmp.lt.s32.totalorder %s18, 1
      %s202 = scalar_select %p201, %s18, 1
      %p203 = scmp.lt.s32.totalorder %s200, 1
      %s204 = scalar_select %p203, %s200, 1
      %s205 = smul.addr %s202, 4
      %s206 = sadd.s32 %s204, %s205
      %s207 = smul.addr %s206, 8
      %s208 = scalar_lea.vmem %s3, %s207
      %s209 = smul.u32 2, %s19
      %v210 = vld [vmem:[%s198] sm:$0xff]
      %v211 = vld [vmem:[%s198 + $0x8] sm:$0xff]
      %v212 = vld [vmem:[%s198 + $0x10] sm:$0xff]
      %v213 = vld [vmem:[%s198 + $0x18] sm:$0xff]
      %v214 = vld [vmem:[%s1] sm:$0xff]
      %v215 = vld [vmem:[%s1 + $0x8] sm:$0x7f]
      %v216 = vld [vmem:[%s2] sm:$0xff]
      %v217 = vld [vmem:[%s2 + $0x8] sm:$0x7f]
      %219 = vset.pattern.permute.xlu0 0
      %220 = vperm.xlu0 %219, %v216
      %v221 = vpop.permute.xlu0 %220
      %224 = vset.pattern.permute.xlu0 0
      %225 = vperm.xlu0 %224, %v217
      %v226 = vpop.permute.xlu0 %225
      %vm228 = vcmask 130048
      %v230 = vsel %vm228, %v214, 0
      %v233 = vsel %vm228, %v215, 0
      %235 = vmatprep.subr.mxu0 %v211
      %236 = vmatpush1.msra.mxu0 %v210
      %237 = vmatprep.subr.mxu0 %v213
      %238 = vmatpush1.msra.mxu0 %v212
      %239 = vmatprep.subr.mxu0 0.0
      %240 = vmatpush1.msra.mxu0 0.0
      %241 = vmatprep.subr.mxu0 0.0
      %242 = vmatpush1.msra.mxu0 0.0
      %243 = vmatprep.subr.mxu0 0.0
      %244 = vmatpush1.msra.mxu0 0.0
      %245 = vmatprep.subr.mxu0 0.0
      %246 = vmatpush1.msra.mxu0 0.0
      %247 = vmatprep.subr.mxu0 0.0
      %248 = vmatpush1.msra.mxu0 0.0
      %249 = vmatprep.subr.mxu0 0.0
      %250 = vmatpush1.msra.mxu0 0.0
      %251 = vmatprep.subr.mxu0 0.0
      %252 = vmatpush1.msra.mxu0 0.0
      %253 = vmatprep.subr.mxu0 0.0
      %254 = vmatpush1.msra.mxu0 0.0
      %255 = vmatprep.subr.mxu0 0.0
      %256 = vmatpush1.msra.mxu0 0.0
      %257 = vmatprep.subr.mxu0 0.0
      %258 = vmatpush1.msra.mxu0 0.0
      %259 = vmatprep.subr.mxu0 0.0
      %260 = vmatpush1.msra.mxu0 0.0
      %261 = vmatprep.subr.mxu0 0.0
      %262 = vmatpush1.msra.mxu0 0.0
      %263 = vmatprep.subr.mxu0 0.0
      %264 = vmatpush1.msra.mxu0 0.0
      %265 = vmatprep.subr.mxu0 0.0
      %266 = vmatpush1.msra.mxu0 0.0
      %267 = vmatprep.subr.mxu0 0.0
      %268 = vmatpush1.msra.mxu0 0.0
      %269 = vmatprep.subr.mxu0 0.0
      %270 = vmatpush1.msra.mxu0 0.0
      %271 = vmatprep.subr.mxu0 0.0
      %272 = vmatpush1.msra.mxu0 0.0
      %273 = vmatprep.subr.mxu0 0.0
      %274 = vmatpush1.msra.mxu0 0.0
      %275 = vmatprep.subr.mxu0 0.0
      %276 = vmatpush1.msra.mxu0 0.0
      %277 = vmatprep.subr.mxu0 0.0
      %278 = vmatpush1.msra.mxu0 0.0
      %279 = vmatprep.subr.mxu0 0.0
      %280 = vmatpush1.msra.mxu0 0.0
      %281 = vmatprep.subr.mxu0 0.0
      %282 = vmatpush1.msra.mxu0 0.0
      %283 = vmatprep.subr.mxu0 0.0
      %284 = vmatpush1.msra.mxu0 0.0
      %285 = vmatprep.subr.mxu0 0.0
      %286 = vmatpush1.msra.mxu0 0.0
      %287 = vmatprep.subr.mxu0 0.0
      %288 = vmatpush1.msra.mxu0 0.0
      %289 = vmatprep.subr.mxu0 0.0
      %290 = vmatpush1.msra.mxu0 0.0
      %291 = vmatprep.subr.mxu0 0.0
      %292 = vmatpush1.msra.mxu0 0.0
      %293 = vmatprep.subr.mxu0 0.0
      %294 = vmatpush1.msra.mxu0 0.0
      %295 = vmatprep.subr.mxu0 0.0
      %296 = vmatpush1.msra.mxu0 0.0
      %297 = vmatprep.subr.mxu0 0.0
      %298 = vmatpush1.msra.mxu0 0.0
      %299 = vmatprep.mubr.f32.mxu0 0.0
      %300 = vmatmul.mubr.f32.gmra.mrb[0].mxu0 %v230
      %v301 = vpop.f32.mrb[0].mxu0
      %v302 = vadd.f32 %v221, %v301
      %v303 = vpop.f32.mrb[0].mxu0
      %v304 = vadd.f32 %v221, %v303
      %305 = vmatprep.mubr.f32.mxu0 0.0
      %306 = vmatmul.mubr.f32.gmra.mrb[0].mxu0 %v233
      %v307 = vpop.f32.mrb[0].mxu0
      %v308 = vadd.f32 %v226, %v307
      %v309 = vpop.f32.mrb[0].mxu0
      %v310 = vadd.f32 %v226, %v309
      %311 = vdwg.mxu0
      %312 = vst [vmem:[%s208] sm:$0xff] %v302
      %313 = vst [vmem:[%s208 + $0x8] sm:$0xff] %v304
      %314 = vst [vmem:[%s208 + $0x10] sm:$0x7f] %v308
      %315 = vst [vmem:[%s208 + $0x18] sm:$0x7f] %v310
      %s316 = smul.u32 2, %s19
      %p317 = scmp.lt.s32.totalorder %s18, 1
      %s318 = scalar_select %p317, %s18, 1
      %p319 = scmp.lt.s32.totalorder %s316, 1
      %s320 = scalar_select %p319, %s316, 1
      %s321 = smul.addr %s318, 4
      %s322 = sadd.s32 %s320, %s321
      %s323 = smul.addr %s322, 8
      %s324 = scalar_lea.vmem %s3, %s323
      // Predicated region
      $region33: #{_rpn_head_forward.2} parent=31 // pred_check
        %p325 = pneg %p116
      $region34: #{_rpn_head_forward.2} parent=31 // pred_check_branch
        %327 = sbr.rel (%p325) target = $region36
      $region35: #{_rpn_head_forward.2} parent=31 // pred_region
        %s328 = smul.u32 2, %s19
      $region36: #{_rpn_head_forward.2} parent=31 // pred_fallthru
        _
    $region32: #{_rpn_head_forward.2} parent=5 // pred_fallthru
      _
    %p329 = scmp.le.s32.totalorder 2, %s9
    // Predicated region
    $region37: #{_rpn_head_forward.2} parent=5 // pred_check
      %p330 = pneg %p329
    $region38: #{_rpn_head_forward.2} parent=5 // pred_check_branch
      %332 = sbr.rel (%p330) target = $region40
    $region39: #{_rpn_head_forward.2} parent=5 // pred_region
      %s333 = ssub.s32 %s9, 2
      // Predicated region
      $region41: #{_rpn_head_forward.2} parent=39 // pred_check
        %p334 = pneg %p122
      $region42: #{_rpn_head_forward.2} parent=39 // pred_check_branch
        %336 = sbr.rel (%p334) target = $region44
      $region43: #{_rpn_head_forward.2} parent=39 // pred_region
        %s337 = smul.u32 2, %s21
        %p338 = scmp.lt.s32.totalorder %s20, 1
        %s339 = scalar_select %p338, %s20, 1
        %p340 = scmp.lt.s32.totalorder %s337, 1
        %s341 = scalar_select %p340, %s337, 1
        %s342 = smul.addr %s339, 4
        %s343 = sadd.s32 %s341, %s342
        %s344 = smul.addr %s343, 8
        %s345 = scalar_lea.vmem %s3, %s344
      $region44: #{_rpn_head_forward.2} parent=39 // pred_fallthru
        _
    $region40: #{_rpn_head_forward.2} parent=5 // pred_fallthru
      _
  $region6: #{_rpn_head_forward.2} parent=0 // loop_footer
    %s13 = sadd.s32 1, %s9
  $region7: #{_rpn_head_forward.2} parent=0 // loop_footer_branch
    %8 = sbr.rel target = $region3
  $region8: #{_rpn_head_forward.2} parent=0 // loop_exit
    _

// kernel: _rpn_head_forward.3
$region0: #{_rpn_head_forward.3}
  #allocation0 [shape = 'u32[]', space=smem, size = 0x4, offset = 0x4, fixed_abs, tag = 'smem constant byte address 0x4 - core index']
  #allocation1 [shape = 'u32[144,128]{1,0:T(1,128)}', space=vmem, size = 0x12000, scoped, tag = 'internal scratch']
  %s0 = inlined_call_operand.vmem [shape: f32[2,16,64], index: 0, kind: input, shape index: {}]
  %s1 = inlined_call_operand.vmem [shape: f32[15,16], index: 1, kind: input, shape index: {}]
  %s2 = inlined_call_operand.vmem [shape: f32[15,1], index: 2, kind: input, shape index: {}]
  %s3 = inlined_call_operand.vmem [shape: f32[2,15,64], index: 3, kind: output, shape index: {}]
  %s4 = sld [smem:[#allocation0]]
  $region45: #{_rpn_head_forward.3} parent=0
    _
  %s6 = ssub.s32 1, %s4
  %s7 = scalar_select 0, %s6, %s4
  loop: start=0, step=1, limit=4
  $region2: #{_rpn_head_forward.3} parent=0 // loop_pre_header
    _
  $region3: #{_rpn_head_forward.3} parent=0 // loop_header
    %s9 = sphi 0, %s13
    %p10 = scmp.ge.s32.totalorder %s9, 4
    %s16 = sphi 0, %s28
    %s17 = sphi 0, %s24
    %s18 = sphi 0, %s16
    %s19 = sphi 0, %s17
    %s20 = sphi 0, %s18
    %s21 = sphi 0, %s19
    %s33 = sphi 0, %s35
    %s36 = sphi 0, %s33
    %s37 = sphi 0, %s36
    %s53 = sphi 0, %s37
    %s57 = sphi 0, %s57
    %s59 = sphi 0, %s57
    %s60 = sphi 0, %s59
    %s74 = sphi 0, %s60
    %s78 = sphi 0, %s78
    %s80 = sphi 0, %s78
    %s81 = sphi 0, %s80
    %s95 = sphi 0, %s81
    %s103 = sphi 0, %s105
    %s106 = sphi 0, %s103
    %s107 = sphi 0, %s106
    %s123 = sphi 0, %s107
  $region4: #{_rpn_head_forward.3} parent=0 // loop_header_branch
    %12 = sbr.rel (%p10) target = $region8
  $region5: #{_rpn_head_forward.3} parent=0 // loop_body
    %s14 = ssub.s32 %s9, 1
    %s15 = ssub.s32 %s9, 2
    %s22 = sadd.s32 1, %s17
    %p23 = scmp.ge.s32.totalorder %s22, 1
    %s24 = scalar_select %p23, 0, %s22
    %s25 = sadd.s32 1, %s16
    %s26 = scalar_select %p23, %s25, %s16
    %p27 = scmp.ge.s32.totalorder %s26, 2
    %s28 = scalar_select %p27, 0, %s26
    %s29 = ssub.s32 %s16, %s28
    %s30 = ssub.s32 %s17, %s24
    %s31 = sor.u32 %s29, %s30
    %p32 = scmp.eq.s32.totalorder %s31, 0
    %s34 = sadd.s32 %s33, 1
    %s35 = scalar_select %p32, %s33, %s34
    %p38 = pneg %p32
    %p39 = scmp.eq.s32.totalorder %s9, 1
    %p40 = por %p38, %p39
    %p41 = scmp.ne.s32.totalorder %s33, %s36
    %p42 = scmp.eq.s32.totalorder %s9, 0
    %p43 = por %p41, %p42
    %p44 = scmp.ne.s32.totalorder %s33, %s36
    %p45 = scmp.eq.s32.totalorder %s14, 1
    %p46 = por %p44, %p45
    %p47 = scmp.ne.s32.totalorder %s36, %s37
    %p48 = scmp.eq.s32.totalorder %s14, 0
    %p49 = por %p47, %p48
    %p50 = scmp.ne.s32.totalorder %s36, %s37
    %p51 = scmp.eq.s32.totalorder %s15, 1
    %p52 = por %p50, %p51
    %p54 = scmp.ne.s32.totalorder %s37, %s53
    %p55 = scmp.eq.s32.totalorder %s15, 0
    %p56 = por %p54, %p55
    %s58 = sadd.s32 %s57, 1
    %p61 = scmp.eq.s32.totalorder %s9, 1
    %p62 = scmp.ne.s32.totalorder %s57, %s59
    %p63 = scmp.eq.s32.totalorder %s9, 0
    %p64 = por %p62, %p63
    %p65 = scmp.ne.s32.totalorder %s57, %s59
    %p66 = scmp.eq.s32.totalorder %s14, 1
    %p67 = por %p65, %p66
    %p68 = scmp.ne.s32.totalorder %s59, %s60
    %p69 = scmp.eq.s32.totalorder %s14, 0
    %p70 = por %p68, %p69
    %p71 = scmp.ne.s32.totalorder %s59, %s60
    %p72 = scmp.eq.s32.totalorder %s15, 1
    %p73 = por %p71, %p72
    %p75 = scmp.ne.s32.totalorder %s60, %s74
    %p76 = scmp.eq.s32.totalorder %s15, 0
    %p77 = por %p75, %p76
    %s79 = sadd.s32 %s78, 1
    %p82 = scmp.eq.s32.totalorder %s9, 1
    %p83 = scmp.ne.s32.totalorder %s78, %s80
    %p84 = scmp.eq.s32.totalorder %s9, 0
    %p85 = por %p83, %p84
    %p86 = scmp.ne.s32.totalorder %s78, %s80
    %p87 = scmp.eq.s32.totalorder %s14, 1
    %p88 = por %p86, %p87
    %p89 = scmp.ne.s32.totalorder %s80, %s81
    %p90 = scmp.eq.s32.totalorder %s14, 0
    %p91 = por %p89, %p90
    %p92 = scmp.ne.s32.totalorder %s80, %s81
    %p93 = scmp.eq.s32.totalorder %s15, 1
    %p94 = por %p92, %p93
    %p96 = scmp.ne.s32.totalorder %s81, %s95
    %p97 = scmp.eq.s32.totalorder %s15, 0
    %p98 = por %p96, %p97
    %s99 = ssub.s32 %s16, %s28
    %s100 = ssub.s32 %s17, %s24
    %s101 = sor.u32 %s99, %s100
    %p102 = scmp.eq.s32.totalorder %s101, 0
    %s104 = sadd.s32 %s103, 1
    %s105 = scalar_select %p102, %s103, %s104
    %p108 = pneg %p102
    %p109 = scmp.eq.s32.totalorder %s9, 1
    %p110 = por %p108, %p109
    %p111 = scmp.ne.s32.totalorder %s103, %s106
    %p112 = scmp.eq.s32.totalorder %s9, 0
    %p113 = por %p111, %p112
    %p114 = scmp.ne.s32.totalorder %s103, %s106
    %p115 = scmp.eq.s32.totalorder %s14, 1
    %p116 = por %p114, %p115
    %p117 = scmp.ne.s32.totalorder %s106, %s107
    %p118 = scmp.eq.s32.totalorder %s14, 0
    %p119 = por %p117, %p118
    %p120 = scmp.ne.s32.totalorder %s106, %s107
    %p121 = scmp.eq.s32.totalorder %s15, 1
    %p122 = por %p120, %p121
    %p124 = scmp.ne.s32.totalorder %s107, %s123
    %p125 = scmp.eq.s32.totalorder %s15, 0
    %p126 = por %p124, %p125
    %p127 = scmp.le.s32.totalorder 1, %s9
    %p128 = scmp.lt.s32.totalorder %s9, 3
    %p129 = pnand %p127, %p128
    %p130 = pneg %p129
    // Predicated region
    $region9: #{_rpn_head_forward.3} parent=5 // pred_check
      _
    $region10: #{_rpn_head_forward.3} parent=5 // pred_check_branch
      %132 = sbr.rel (%p129) target = $region12
    $region11: #{_rpn_head_forward.3} parent=5 // pred_region
      %s133 = ssub.s32 %s9, 1
      // Predicated region
      $region13: #{_rpn_head_forward.3} parent=11 // pred_check
        %p134 = pneg %p70
      $region14: #{_rpn_head_forward.3} parent=11 // pred_check_branch
        %136 = sbr.rel (%p134) target = $region16
      $region15: #{_rpn_head_forward.3} parent=11 // pred_region
        _
      $region16: #{_rpn_head_forward.3} parent=11 // pred_fallthru
        _
      // Predicated region
      $region17: #{_rpn_head_forward.3} parent=11 // pred_check
        %p137 = pneg %p91
      $region18: #{_rpn_head_forward.3} parent=11 // pred_check_branch
        %139 = sbr.rel (%p137) target = $region20
      $region19: #{_rpn_head_forward.3} parent=11 // pred_region
        _
      $region20: #{_rpn_head_forward.3} parent=11 // pred_fallthru
        _
    $region12: #{_rpn_head_forward.3} parent=5 // pred_fallthru
      _
    %p140 = scmp.lt.s32.totalorder %s9, 2
    // Predicated region
    $region21: #{_rpn_head_forward.3} parent=5 // pred_check
      %p141 = pneg %p140
    $region22: #{_rpn_head_forward.3} parent=5 // pred_check_branch
      %143 = sbr.rel (%p141) target = $region24
    $region23: #{_rpn_head_forward.3} parent=5 // pred_region
      // Predicated region
      $region25: #{_rpn_head_forward.3} parent=23 // pred_check
        %p144 = pneg %p43
      $region26: #{_rpn_head_forward.3} parent=23 // pred_check_branch
        %146 = sbr.rel (%p144) target = $region28
      $region27: #{_rpn_head_forward.3} parent=23 // pred_region
        %p147 = scmp.lt.s32.totalorder %s16, 1
        %s148 = scalar_select %p147, %s16, 1
        %p149 = scmp.lt.s32.totalorder %s17, 0
        %s150 = scalar_select %p149, %s17, 0
        %s151 = smul.addr %s148, 2
        %s152 = sadd.s32 %s150, %s151
        %s153 = smul.addr %s152, 8
        %s154 = scalar_lea.vmem %s0, %s153
      $region28: #{_rpn_head_forward.3} parent=23 // pred_fallthru
        _
    $region24: #{_rpn_head_forward.3} parent=5 // pred_fallthru
      _
    %p155 = scmp.le.s32.totalorder 1, %s9
    %p156 = scmp.lt.s32.totalorder %s9, 3
    %p157 = pnand %p155, %p156
    %p158 = pneg %p157
    // Predicated region
    $region29: #{_rpn_head_forward.3} parent=5 // pred_check
      _
    $region30: #{_rpn_head_forward.3} parent=5 // pred_check_branch
      %160 = sbr.rel (%p157) target = $region32
    $region31: #{_rpn_head_forward.3} parent=5 // pred_region
      %s161 = ssub.s32 %s9, 1
      %p162 = scmp.lt.s32.totalorder %s18, 1
      %s163 = scalar_select %p162, %s18, 1
      %p164 = scmp.lt.s32.totalorder %s19, 0
      %s165 = scalar_select %p164, %s19, 0
      %s166 = smul.addr %s163, 2
      %s167 = sadd.s32 %s165, %s166
      %s168 = smul.addr %s167, 8
      %s169 = scalar_lea.vmem %s0, %s168
      %p170 = pneg %p49
      %p171 = pneg %p46
      %p172 = pneg %p70
      %p173 = pneg %p67
      %p174 = pneg %p91
      %p175 = pneg %p88
      %p176 = pneg %p119
      %p177 = pneg %p116
      %p178 = scmp.lt.s32.totalorder %s18, 1
      %s179 = scalar_select %p178, %s18, 1
      %p180 = scmp.lt.s32.totalorder %s19, 0
      %s181 = scalar_select %p180, %s19, 0
      %s182 = smul.addr %s179, 2
      %s183 = sadd.s32 %s181, %s182
      %s184 = smul.addr %s183, 8
      %s185 = scalar_lea.vmem %s3, %s184
      %p186 = scmp.lt.s32.totalorder %s18, 1
      %s187 = scalar_select %p186, %s18, 1
      %p188 = scmp.lt.s32.totalorder %s19, 0
      %s189 = scalar_select %p188, %s19, 0
      %s190 = smul.addr %s187, 2
      %s191 = sadd.s32 %s189, %s190
      %s192 = smul.addr %s191, 8
      %s193 = scalar_lea.vmem %s0, %s192
      %p194 = scmp.lt.s32.totalorder %s18, 1
      %s195 = scalar_select %p194, %s18, 1
      %p196 = scmp.lt.s32.totalorder %s19, 0
      %s197 = scalar_select %p196, %s19, 0
      %s198 = smul.addr %s195, 2
      %s199 = sadd.s32 %s197, %s198
      %s200 = smul.addr %s199, 8
      %s201 = scalar_lea.vmem %s3, %s200
      %v202 = vld [vmem:[%s193] sm:$0xff]
      %v203 = vld [vmem:[%s193 + $0x8] sm:$0xff]
      %v204 = vld [vmem:[%s1] sm:$0xff]
      %v205 = vld [vmem:[%s1 + $0x8] sm:$0x7f]
      %v206 = vld [vmem:[%s2] sm:$0xff]
      %v207 = vld [vmem:[%s2 + $0x8] sm:$0x7f]
      %209 = vset.pattern.permute.xlu0 0
      %210 = vperm.xlu0 %209, %v206
      %v211 = vpop.permute.xlu0 %210
      %214 = vset.pattern.permute.xlu0 0
      %215 = vperm.xlu0 %214, %v207
      %v216 = vpop.permute.xlu0 %215
      %vm218 = vcmask 130048
      %v220 = vsel %vm218, %v204, 0
      %v223 = vsel %vm218, %v205, 0
      %225 = vmatprep.subr.mxu0 0.0
      %226 = vmatpush1.msra.mxu0 %v202
      %227 = vmatprep.subr.mxu0 0.0
      %228 = vmatpush1.msra.mxu0 %v203
      %229 = vmatprep.subr.mxu0 0.0
      %230 = vmatpush1.msra.mxu0 0.0
      %231 = vmatprep.subr.mxu0 0.0
      %232 = vmatpush1.msra.mxu0 0.0
      %233 = vmatprep.subr.mxu0 0.0
      %234 = vmatpush1.msra.mxu0 0.0
      %235 = vmatprep.subr.mxu0 0.0
      %236 = vmatpush1.msra.mxu0 0.0
      %237 = vmatprep.subr.mxu0 0.0
      %238 = vmatpush1.msra.mxu0 0.0
      %239 = vmatprep.subr.mxu0 0.0
      %240 = vmatpush1.msra.mxu0 0.0
      %241 = vmatprep.subr.mxu0 0.0
      %242 = vmatpush1.msra.mxu0 0.0
      %243 = vmatprep.subr.mxu0 0.0
      %244 = vmatpush1.msra.mxu0 0.0
      %245 = vmatprep.subr.mxu0 0.0
      %246 = vmatpush1.msra.mxu0 0.0
      %247 = vmatprep.subr.mxu0 0.0
      %248 = vmatpush1.msra.mxu0 0.0
      %249 = vmatprep.subr.mxu0 0.0
      %250 = vmatpush1.msra.mxu0 0.0
      %251 = vmatprep.subr.mxu0 0.0
      %252 = vmatpush1.msra.mxu0 0.0
      %253 = vmatprep.subr.mxu0 0.0
      %254 = vmatpush1.msra.mxu0 0.0
      %255 = vmatprep.subr.mxu0 0.0
      %256 = vmatpush1.msra.mxu0 0.0
      %257 = vmatprep.subr.mxu0 0.0
      %258 = vmatpush1.msra.mxu0 0.0
      %259 = vmatprep.subr.mxu0 0.0
      %260 = vmatpush1.msra.mxu0 0.0
      %261 = vmatprep.subr.mxu0 0.0
      %262 = vmatpush1.msra.mxu0 0.0
      %263 = vmatprep.subr.mxu0 0.0
      %264 = vmatpush1.msra.mxu0 0.0
      %265 = vmatprep.subr.mxu0 0.0
      %266 = vmatpush1.msra.mxu0 0.0
      %267 = vmatprep.subr.mxu0 0.0
      %268 = vmatpush1.msra.mxu0 0.0
      %269 = vmatprep.subr.mxu0 0.0
      %270 = vmatpush1.msra.mxu0 0.0
      %271 = vmatprep.subr.mxu0 0.0
      %272 = vmatpush1.msra.mxu0 0.0
      %273 = vmatprep.subr.mxu0 0.0
      %274 = vmatpush1.msra.mxu0 0.0
      %275 = vmatprep.subr.mxu0 0.0
      %276 = vmatpush1.msra.mxu0 0.0
      %277 = vmatprep.subr.mxu0 0.0
      %278 = vmatpush1.msra.mxu0 0.0
      %279 = vmatprep.subr.mxu0 0.0
      %280 = vmatpush1.msra.mxu0 0.0
      %281 = vmatprep.subr.mxu0 0.0
      %282 = vmatpush1.msra.mxu0 0.0
      %283 = vmatprep.subr.mxu0 0.0
      %284 = vmatpush1.msra.mxu0 0.0
      %285 = vmatprep.subr.mxu0 0.0
      %286 = vmatpush1.msra.mxu0 0.0
      %287 = vmatprep.subr.mxu0 0.0
      %288 = vmatpush1.msra.mxu0 0.0
      %289 = vmatprep.mubr.f32.mxu0 0.0
      %290 = vmatmul.mubr.f32.gmra.mrb[0].mxu0 %v220
      %v291 = vpop.f32.mrb[0].mxu0
      %v292 = vadd.f32 %v211, %v291
      %v293 = vpop.f32.mrb[0].mxu0
      %294 = vmatprep.mubr.f32.mxu0 0.0
      %295 = vmatmul.mubr.f32.gmra.mrb[0].mxu0 %v223
      %v296 = vpop.f32.mrb[0].mxu0
      %v297 = vadd.f32 %v216, %v296
      %v298 = vpop.f32.mrb[0].mxu0
      %299 = vdwg.mxu0
      %vm300 = vcmask 523264
      %301 = vst.msk [vmem:[%s201] sm:$0xff] %vm300, %v292
      %vm302 = vcmask 522240
      %303 = vst.msk [vmem:[%s201 + $0x8] sm:$0x7f] %vm302, %v297
      %p304 = scmp.lt.s32.totalorder %s18, 1
      %s305 = scalar_select %p304, %s18, 1
      %p306 = scmp.lt.s32.totalorder %s19, 0
      %s307 = scalar_select %p306, %s19, 0
      %s308 = smul.addr %s305, 2
      %s309 = sadd.s32 %s307, %s308
      %s310 = smul.addr %s309, 8
      %s311 = scalar_lea.vmem %s3, %s310
      // Predicated region
      $region33: #{_rpn_head_forward.3} parent=31 // pred_check
        %p312 = pneg %p116
      $region34: #{_rpn_head_forward.3} parent=31 // pred_check_branch
        %314 = sbr.rel (%p312) target = $region36
      $region35: #{_rpn_head_forward.3} parent=31 // pred_region
        _
      $region36: #{_rpn_head_forward.3} parent=31 // pred_fallthru
        _
    $region32: #{_rpn_head_forward.3} parent=5 // pred_fallthru
      _
    %p315 = scmp.le.s32.totalorder 2, %s9
    // Predicated region
    $region37: #{_rpn_head_forward.3} parent=5 // pred_check
      %p316 = pneg %p315
    $region38: #{_rpn_head_forward.3} parent=5 // pred_check_branch
      %318 = sbr.rel (%p316) target = $region40
    $region39: #{_rpn_head_forward.3} parent=5 // pred_region
      %s319 = ssub.s32 %s9, 2
      // Predicated region
      $region41: #{_rpn_head_forward.3} parent=39 // pred_check
        %p320 = pneg %p122
      $region42: #{_rpn_head_forward.3} parent=39 // pred_check_branch
        %322 = sbr.rel (%p320) target = $region44
      $region43: #{_rpn_head_forward.3} parent=39 // pred_region
        %p323 = scmp.lt.s32.totalorder %s20, 1
        %s324 = scalar_select %p323, %s20, 1
        %p325 = scmp.lt.s32.totalorder %s21, 0
        %s326 = scalar_select %p325, %s21, 0
        %s327 = smul.addr %s324, 2
        %s328 = sadd.s32 %s326, %s327
        %s329 = smul.addr %s328, 8
        %s330 = scalar_lea.vmem %s3, %s329
      $region44: #{_rpn_head_forward.3} parent=39 // pred_fallthru
        _
    $region40: #{_rpn_head_forward.3} parent=5 // pred_fallthru
      _
  $region6: #{_rpn_head_forward.3} parent=0 // loop_footer
    %s13 = sadd.s32 1, %s9
  $region7: #{_rpn_head_forward.3} parent=0 // loop_footer_branch
    %8 = sbr.rel target = $region3
  $region8: #{_rpn_head_forward.3} parent=0 // loop_exit
    _

</llo_original>
